<compile_context>
chip_gen: v7x
topology: tpu7x:2x2x1
jax: 0.10.0
libtpu: 0.0.40
codegen_flags: <defaults>
</compile_context>

<pallas_src>
import functools

import jax
import jax.numpy as jnp
from jax.experimental import pallas as pl
from jax.experimental.pallas import tpu as pltpu


def _round_up(n, m):
    return ((n + m - 1) // m) * m


def _encoder_kernel(x_ref, w1_ref, b1_ref, w2_ref, b2_ref, eps_ref, out_ref, *, z_dim):
    # phi_x: Linear + ReLU          (tile_b, x_dim) @ (x_dim, h_dim)
    h = jnp.dot(x_ref[...], w1_ref[...], preferred_element_type=jnp.float32) + b1_ref[...]
    h = jnp.maximum(h, 0.0)

    # Fused mean|std projection: one MXU matmul into (tile_b, 2*z_dim)
    lin2 = jnp.dot(h, w2_ref[...], preferred_element_type=jnp.float32) + b2_ref[...]
    m_lin = lin2[:, :z_dim]
    s_lin = lin2[:, z_dim:]

    # Exact sigmoid via a single EUP tanh:  sigmoid(x) = 0.5 * tanh(x/2) + 0.5
    z_mean = 0.5 * jnp.tanh(0.5 * m_lin) + 0.5

    # Softplus (overflow-free form, numerically equal to torch's threshold=20):
    #   softplus(x) = max(x, 0) + log1p(exp(-|x|))
    z_std = jnp.maximum(s_lin, 0.0) + jnp.log1p(jnp.exp(-jnp.abs(s_lin)))

    # Reparameterized sample: eps * std + mean
    z = eps_ref[...] * z_std + z_mean

    # Lane-dense stacked output slab (3, tile_b, z_dim): one writeback DMA,
    # no in-kernel concatenation / lane-offset masked stores.
    out_ref[0, :, :] = z
    out_ref[1, :, :] = z_mean
    out_ref[2, :, :] = z_std


def _choose_tile_b(B):
    """Pick a batch tile: big enough to amortize per-step overhead (>=~2 MiB
    streamed per step at the reference feature sizes), while keeping >= 2 grid
    steps so the parallel batch axis shards across both v7x TensorCores."""
    target = 8192
    b8 = _round_up(max(B, 1), 8)
    if b8 <= 2 * target:
        tile = _round_up(pl.cdiv(b8, 2), 8)   # exactly ~2 steps for small B
    else:
        tile = target                         # many large steps for big B
    return max(8, tile)


def encoder_forward(x, params, eps, *, tile_b=None):
    """Encoder forward pass as a batch-tiled Pallas kernel.

    Returns (z, z_mean, z_std), each (B, z_dim) float32.
    """
    B, x_dim = x.shape
    h_dim = params["w1"].shape[1]
    z_dim = params["wm"].shape[1]

    # Fuse the two z-projections into one weight/bias (done once, outside kernel).
    w2 = jnp.concatenate([params["wm"], params["ws"]], axis=1)   # (h_dim, 2*z_dim)
    b2 = jnp.concatenate([params["bm"], params["bs"]], axis=1)   # (1, 2*z_dim)

    if tile_b is None:
        tile_b = _choose_tile_b(B)
    tile_b = max(8, _round_up(tile_b, 8))

    Bp = _round_up(B, tile_b)
    if Bp != B:
        pad = Bp - B
        x = jnp.pad(x, ((0, pad), (0, 0)))
        eps = jnp.pad(eps, ((0, pad), (0, 0)))
    grid = (Bp // tile_b,)

    cost = pl.CostEstimate(
        flops=2 * Bp * (x_dim * h_dim + h_dim * 2 * z_dim),
        transcendentals=3 * Bp * z_dim,          # tanh + exp + log1p per z element
        bytes_accessed=4 * (Bp * x_dim + Bp * z_dim + 3 * Bp * z_dim
                            + x_dim * h_dim + h_dim + h_dim * 2 * z_dim + 2 * z_dim),
    )

    out = pl.pallas_call(
        functools.partial(_encoder_kernel, z_dim=z_dim),
        out_shape=jax.ShapeDtypeStruct((3, Bp, z_dim), jnp.float32),
        grid=grid,
        in_specs=[
            pl.BlockSpec((tile_b, x_dim), lambda i: (i, 0)),       # x   (streamed)
            pl.BlockSpec((x_dim, h_dim), lambda i: (0, 0)),        # w1  (resident)
            pl.BlockSpec((1, h_dim), lambda i: (0, 0)),            # b1  (resident)
            pl.BlockSpec((h_dim, 2 * z_dim), lambda i: (0, 0)),    # [wm|ws]
            pl.BlockSpec((1, 2 * z_dim), lambda i: (0, 0)),        # [bm|bs]
            pl.BlockSpec((tile_b, z_dim), lambda i: (i, 0)),       # eps (streamed)
        ],
        out_specs=pl.BlockSpec((3, tile_b, z_dim), lambda i: (0, i, 0)),
        compiler_params=pltpu.CompilerParams(
            dimension_semantics=("parallel",),
            # Raise the scoped-VMEM allowance above the 16 MiB (v5e) / 32 MiB
            # (v6e/v7x) defaults for the larger tiles, with headroom under
            # v7x's 64 MiB physical VMEM.
            vmem_limit_bytes=48 * 1024 * 1024,
        ),
        cost_estimate=cost,
    )(x, params["w1"], params["b1"], w2, b2, eps)

    z = out[0, :B]
    z_mean = out[1, :B]
    z_std = out[2, :B]
    return z, z_mean, z_std


def init_params(key, x_dim, h_dim, z_dim):
    """Deterministic init mimicking nn.Linear's default U(-1/sqrt(fan_in), 1/sqrt(fan_in))."""
    ks = jax.random.split(key, 6)

    def lin(kw, kb, fan_in, fan_out):
        bound = 1.0 / jnp.sqrt(fan_in)
        w = jax.random.uniform(kw, (fan_in, fan_out), jnp.float32, -bound, bound)
        b = jax.random.uniform(kb, (1, fan_out), jnp.float32, -bound, bound)
        return w, b

    w1, b1 = lin(ks[0], ks[1], x_dim, h_dim)
    wm, bm = lin(ks[2], ks[3], h_dim, z_dim)
    ws, bs = lin(ks[4], ks[5], h_dim, z_dim)
    return {"w1": w1, "b1": b1, "wm": wm, "bm": bm, "ws": ws, "bs": bs}


def reference_forward(x, params, eps):
    """Pure-JAX reference for correctness checking."""
    h = jnp.maximum(x @ params["w1"] + params["b1"], 0.0)
    z_mean = jax.nn.sigmoid(h @ params["wm"] + params["bm"])
    z_std = jax.nn.softplus(h @ params["ws"] + params["bs"])
    z = eps * z_std + z_mean
    return z, z_mean, z_std


if __name__ == "__main__":
    # Small shapes; B is deliberately not a multiple of 8 so the demo exercises
    # the padding path and a 2-step batch grid (auto tile = ceil(B/2) rounded).
    B, x_dim, h_dim, z_dim = 20, 16, 32, 8

    key = jax.random.PRNGKey(0)
    k_params, k_x, k_eps = jax.random.split(key, 3)

    params = init_params(k_params, x_dim, h_dim, z_dim)
    x = jax.random.normal(k_x, (B, x_dim), jnp.float32)
    # TODO(synk): torch's global CPU RNG (FloatTensor(...).normal_()) has no
    # bit-exact Pallas/JAX equivalent; eps is drawn externally and streamed in.
    eps = jax.random.normal(k_eps, (B, z_dim), jnp.float32)

    z, z_mean, z_std = encoder_forward(x, params, eps)
    jax.block_until_ready((z, z_mean, z_std))

    z_ref, m_ref, s_ref = reference_forward(x, params, eps)
    # All paths use exact math now (tanh-based sigmoid) -> tight tolerances.
    assert jnp.allclose(z_std, s_ref, atol=1e-5), "z_std mismatch"
    assert jnp.allclose(z_mean, m_ref, atol=1e-5), "z_mean mismatch"
    assert jnp.allclose(z, z_ref, atol=1e-5), "z mismatch"

    print("KERNEL_OK")
</pallas_src>

<mosaic_0001>
module attributes {stable_mosaic.version = 11 : i64} {
  func.func @_encoder_kernel(%arg0: i32, %arg1: memref<16x16xf32, #tpu.memory_space<vmem>>, %arg2: memref<16x32xf32, #tpu.memory_space<vmem>>, %arg3: memref<1x32xf32, #tpu.memory_space<vmem>>, %arg4: memref<32x16xf32, #tpu.memory_space<vmem>>, %arg5: memref<1x16xf32, #tpu.memory_space<vmem>>, %arg6: memref<16x8xf32, #tpu.memory_space<vmem>>, %arg7: memref<3x16x8xf32, #tpu.memory_space<vmem>>) attributes {dimension_semantics = [#tpu.dimension_semantics<parallel>], iteration_bounds = array<i64: 2>, scalar_prefetch = 0 : i64, scratch_operands = 0 : i64, tpu.core_type = #tpu.core_type<tc>, window_params = [{transform_indices = @transform_0, window_bounds = array<i64: 16, 16>}, {pipeline_mode = #tpu.pipeline_mode<synchronous>, transform_indices = @transform_1, window_bounds = array<i64: 16, 32>}, {pipeline_mode = #tpu.pipeline_mode<synchronous>, transform_indices = @transform_2, window_bounds = array<i64: 1, 32>}, {pipeline_mode = #tpu.pipeline_mode<synchronous>, transform_indices = @transform_3, window_bounds = array<i64: 32, 16>}, {pipeline_mode = #tpu.pipeline_mode<synchronous>, transform_indices = @transform_4, window_bounds = array<i64: 1, 16>}, {transform_indices = @transform_5, window_bounds = array<i64: 16, 8>}, {transform_indices = @transform_6, window_bounds = array<i64: 3, 16, 8>}]} {
    %c0 = arith.constant 0 : index
    %c0_0 = arith.constant 0 : index
    %0 = vector.load %arg1[%c0, %c0_0] : memref<16x16xf32, #tpu.memory_space<vmem>>, vector<16x16xf32>
    %c0_1 = arith.constant 0 : index
    %c0_2 = arith.constant 0 : index
    %1 = vector.load %arg2[%c0_1, %c0_2] : memref<16x32xf32, #tpu.memory_space<vmem>>, vector<16x32xf32>
    %cst = arith.constant dense<0.000000e+00> : vector<16x32xf32>
    %2 = tpu.matmul %0, %1, %cst {dimension_numbers = #tpu.dot_dimension_numbers<[1], [0], [0], [1], [0, 0, 1, 1], [], []>} : vector<16x16xf32>, vector<16x32xf32>, vector<16x32xf32> -> vector<16x32xf32>
    %c0_3 = arith.constant 0 : index
    %c0_4 = arith.constant 0 : index
    %3 = vector.load %arg3[%c0_3, %c0_4] : memref<1x32xf32, #tpu.memory_space<vmem>>, vector<1x32xf32>
    %4 = vector.broadcast %3 : vector<1x32xf32> to vector<16x32xf32>
    %5 = arith.addf %2, %4 : vector<16x32xf32>
    %cst_5 = arith.constant 0.000000e+00 : f32
    %6 = vector.broadcast %cst_5 : f32 to vector<16x32xf32>
    %7 = arith.maximumf %5, %6 : vector<16x32xf32>
    %c0_6 = arith.constant 0 : index
    %c0_7 = arith.constant 0 : index
    %8 = vector.load %arg4[%c0_6, %c0_7] : memref<32x16xf32, #tpu.memory_space<vmem>>, vector<32x16xf32>
    %cst_8 = arith.constant dense<0.000000e+00> : vector<16x16xf32>
    %9 = tpu.matmul %7, %8, %cst_8 {dimension_numbers = #tpu.dot_dimension_numbers<[1], [0], [0], [1], [0, 0, 1, 1], [], []>} : vector<16x32xf32>, vector<32x16xf32>, vector<16x16xf32> -> vector<16x16xf32>
    %c0_9 = arith.constant 0 : index
    %c0_10 = arith.constant 0 : index
    %10 = vector.load %arg5[%c0_9, %c0_10] : memref<1x16xf32, #tpu.memory_space<vmem>>, vector<1x16xf32>
    %11 = vector.broadcast %10 : vector<1x16xf32> to vector<16x16xf32>
    %12 = arith.addf %9, %11 : vector<16x16xf32>
    %13 = vector.extract_strided_slice %12 {offsets = [0, 0], sizes = [16, 8], strides = [1, 1]} : vector<16x16xf32> to vector<16x8xf32>
    %14 = vector.extract_strided_slice %12 {offsets = [0, 8], sizes = [16, 8], strides = [1, 1]} : vector<16x16xf32> to vector<16x8xf32>
    %cst_11 = arith.constant 5.000000e-01 : f32
    %15 = vector.broadcast %cst_11 : f32 to vector<16x8xf32>
    %16 = arith.mulf %15, %13 : vector<16x8xf32>
    %17 = math.tanh %16 : vector<16x8xf32>
    %cst_12 = arith.constant 5.000000e-01 : f32
    %18 = vector.broadcast %cst_12 : f32 to vector<16x8xf32>
    %19 = arith.mulf %18, %17 : vector<16x8xf32>
    %cst_13 = arith.constant 5.000000e-01 : f32
    %20 = vector.broadcast %cst_13 : f32 to vector<16x8xf32>
    %21 = arith.addf %19, %20 : vector<16x8xf32>
    %cst_14 = arith.constant 0.000000e+00 : f32
    %22 = vector.broadcast %cst_14 : f32 to vector<16x8xf32>
    %23 = arith.maximumf %14, %22 : vector<16x8xf32>
    %24 = math.absf %14 : vector<16x8xf32>
    %cst_15 = arith.constant 0.000000e+00 : f32
    %25 = vector.broadcast %cst_15 : f32 to vector<16x8xf32>
    %26 = arith.subf %25, %24 : vector<16x8xf32>
    %27 = math.exp %26 : vector<16x8xf32>
    %28 = math.log1p %27 : vector<16x8xf32>
    %29 = arith.addf %23, %28 : vector<16x8xf32>
    %c0_16 = arith.constant 0 : index
    %c0_17 = arith.constant 0 : index
    %30 = vector.load %arg6[%c0_16, %c0_17] : memref<16x8xf32, #tpu.memory_space<vmem>>, vector<16x8xf32>
    %31 = arith.mulf %30, %29 : vector<16x8xf32>
    %32 = arith.addf %31, %21 : vector<16x8xf32>
    %c0_18 = arith.constant 0 : index
    %c0_19 = arith.constant 0 : index
    %c0_20 = arith.constant 0 : index
    %33 = vector.load %arg7[%c0_18, %c0_19, %c0_20] : memref<3x16x8xf32, #tpu.memory_space<vmem>>, vector<1x16x8xf32>
    %34 = vector.shape_cast %33 : vector<1x16x8xf32> to vector<16x8xf32>
    %35 = vector.shape_cast %32 : vector<16x8xf32> to vector<1x16x8xf32>
    tpu.vector_store %arg7[%c0_18, %c0_19, %c0_20], %35 {strides = array<i32>} : memref<3x16x8xf32, #tpu.memory_space<vmem>>, vector<1x16x8xf32>,
    %c1 = arith.constant 1 : index
    %c0_21 = arith.constant 0 : index
    %c0_22 = arith.constant 0 : index
    %36 = vector.load %arg7[%c1, %c0_21, %c0_22] : memref<3x16x8xf32, #tpu.memory_space<vmem>>, vector<1x16x8xf32>
    %37 = vector.shape_cast %36 : vector<1x16x8xf32> to vector<16x8xf32>
    %38 = vector.shape_cast %21 : vector<16x8xf32> to vector<1x16x8xf32>
    tpu.vector_store %arg7[%c1, %c0_21, %c0_22], %38 {strides = array<i32>} : memref<3x16x8xf32, #tpu.memory_space<vmem>>, vector<1x16x8xf32>,
    %c2 = arith.constant 2 : index
    %c0_23 = arith.constant 0 : index
    %c0_24 = arith.constant 0 : index
    %39 = vector.load %arg7[%c2, %c0_23, %c0_24] : memref<3x16x8xf32, #tpu.memory_space<vmem>>, vector<1x16x8xf32>
    %40 = vector.shape_cast %39 : vector<1x16x8xf32> to vector<16x8xf32>
    %41 = vector.shape_cast %29 : vector<16x8xf32> to vector<1x16x8xf32>
    tpu.vector_store %arg7[%c2, %c0_23, %c0_24], %41 {strides = array<i32>} : memref<3x16x8xf32, #tpu.memory_space<vmem>>, vector<1x16x8xf32>,
    return
  }
  func.func @transform_0(%arg0: i32) -> (i32, i32) {
    %c0_i32 = arith.constant 0 : i32
    %c0_i32_0 = arith.constant 0 : i32
    return %arg0, %c0_i32 : i32, i32
  }
  func.func @transform_1(%arg0: i32) -> (i32, i32) {
    %c0_i32 = arith.constant 0 : i32
    %c0_i32_0 = arith.constant 0 : i32
    %c0_i32_1 = arith.constant 0 : i32
    return %c0_i32, %c0_i32_0 : i32, i32
  }
  func.func @transform_2(%arg0: i32) -> (i32, i32) {
    %c0_i32 = arith.constant 0 : i32
    %c0_i32_0 = arith.constant 0 : i32
    %c0_i32_1 = arith.constant 0 : i32
    return %c0_i32, %c0_i32_0 : i32, i32
  }
  func.func @transform_3(%arg0: i32) -> (i32, i32) {
    %c0_i32 = arith.constant 0 : i32
    %c0_i32_0 = arith.constant 0 : i32
    %c0_i32_1 = arith.constant 0 : i32
    return %c0_i32, %c0_i32_0 : i32, i32
  }
  func.func @transform_4(%arg0: i32) -> (i32, i32) {
    %c0_i32 = arith.constant 0 : i32
    %c0_i32_0 = arith.constant 0 : i32
    %c0_i32_1 = arith.constant 0 : i32
    return %c0_i32, %c0_i32_0 : i32, i32
  }
  func.func @transform_5(%arg0: i32) -> (i32, i32) {
    %c0_i32 = arith.constant 0 : i32
    %c0_i32_0 = arith.constant 0 : i32
    return %arg0, %c0_i32 : i32, i32
  }
  func.func @transform_6(%arg0: i32) -> (i32, i32, i32) {
    %c0_i32 = arith.constant 0 : i32
    %c0_i32_0 = arith.constant 0 : i32
    %c0_i32_1 = arith.constant 0 : i32
    return %c0_i32, %arg0, %c0_i32_0 : i32, i32, i32
  }
}

</mosaic_0001>

<llo_original>
// kernel: tpu_custom_call.1
$region0: #{tpu_custom_call.1}
  #allocation0 [shape = 'u32[]', space=smem, size = 0x4, offset = 0x4, fixed_abs, tag = 'smem constant byte address 0x4 - core index']
  #allocation1 [shape = 'u32[144,128]{1,0:T(1,128)}', space=vmem, size = 0x12000, scoped, tag = 'internal scratch']
  %s0 = inlined_call_operand.vmem [shape: f32[32,16], index: 0, kind: input, shape index: {}]
  %s1 = inlined_call_operand.vmem [shape: f32[16,32], index: 1, kind: input, shape index: {}]
  %s2 = inlined_call_operand.vmem [shape: f32[1,32], index: 2, kind: input, shape index: {}]
  %s3 = inlined_call_operand.vmem [shape: f32[32,16], index: 3, kind: input, shape index: {}]
  %s4 = inlined_call_operand.vmem [shape: f32[1,16], index: 4, kind: input, shape index: {}]
  %s5 = inlined_call_operand.vmem [shape: f32[32,8], index: 5, kind: input, shape index: {}]
  %s6 = inlined_call_operand.vmem [shape: f32[3,32,8], index: 6, kind: output, shape index: {}]
  %s7 = sld [smem:[#allocation0]]
  $region91: #{tpu_custom_call.1} parent=0
    _
  %s9 = ssub.s32 1, %s7
  %s10 = scalar_select 0, %s9, %s7
  $region1: #{tpu_custom_call.1} parent=0
    #allocation2 [shape = 'u8[49152]{0}', space=vmem, size = 0xc000, scoped, tag = 'output window, operand 0']
    loop: start=0, step=1, limit=4
    $region2: #{tpu_custom_call.1} parent=1 // loop_pre_header
      _
    $region3: #{tpu_custom_call.1} parent=1 // loop_header
      %s12 = sphi 0, %s16
      %p13 = scmp.ge.s32.totalorder %s12, 4
      %s22 = sphi 0, %s24
      %s25 = sphi 0, %s22
      %s26 = sphi 0, %s25
      %s42 = sphi 0, %s26
      %s46 = sphi 0, %s46
      %s48 = sphi 0, %s46
      %s49 = sphi 0, %s48
      %s63 = sphi 0, %s49
      %s67 = sphi 0, %s67
      %s69 = sphi 0, %s67
      %s70 = sphi 0, %s69
      %s84 = sphi 0, %s70
      %s88 = sphi 0, %s88
      %s90 = sphi 0, %s88
      %s91 = sphi 0, %s90
      %s105 = sphi 0, %s91
      %s109 = sphi 0, %s109
      %s111 = sphi 0, %s109
      %s112 = sphi 0, %s111
      %s126 = sphi 0, %s112
      %s132 = sphi 0, %s134
      %s135 = sphi 0, %s132
      %s136 = sphi 0, %s135
      %s152 = sphi 0, %s136
      %s158 = sphi 0, %s160
      %s161 = sphi 0, %s158
      %s162 = sphi 0, %s161
      %s178 = sphi 0, %s162
    $region4: #{tpu_custom_call.1} parent=1 // loop_header_branch
      %15 = sbr.rel (%p13) target = $region8
    $region5: #{tpu_custom_call.1} parent=1 // loop_body
      %s17 = ssub.s32 %s12, 1
      %s18 = ssub.s32 %s12, 2
      %s19 = sadd.s32 %s12, 1
      %s20 = ssub.s32 %s12, %s19
      %p21 = scmp.eq.s32.totalorder %s20, 0
      %s23 = sadd.s32 %s22, 1
      %s24 = scalar_select %p21, %s22, %s23
      %p27 = pneg %p21
      %p28 = scmp.eq.s32.totalorder %s12, 1
      %p29 = por %p27, %p28
      %p30 = scmp.ne.s32.totalorder %s22, %s25
      %p31 = scmp.eq.s32.totalorder %s12, 0
      %p32 = por %p30, %p31
      %p33 = scmp.ne.s32.totalorder %s22, %s25
      %p34 = scmp.eq.s32.totalorder %s17, 1
      %p35 = por %p33, %p34
      %p36 = scmp.ne.s32.totalorder %s25, %s26
      %p37 = scmp.eq.s32.totalorder %s17, 0
      %p38 = por %p36, %p37
      %p39 = scmp.ne.s32.totalorder %s25, %s26
      %p40 = scmp.eq.s32.totalorder %s18, 1
      %p41 = por %p39, %p40
      %p43 = scmp.ne.s32.totalorder %s26, %s42
      %p44 = scmp.eq.s32.totalorder %s18, 0
      %p45 = por %p43, %p44
      %s47 = sadd.s32 %s46, 1
      %p50 = scmp.eq.s32.totalorder %s12, 1
      %p51 = scmp.ne.s32.totalorder %s46, %s48
      %p52 = scmp.eq.s32.totalorder %s12, 0
      %p53 = por %p51, %p52
      %p54 = scmp.ne.s32.totalorder %s46, %s48
      %p55 = scmp.eq.s32.totalorder %s17, 1
      %p56 = por %p54, %p55
      %p57 = scmp.ne.s32.totalorder %s48, %s49
      %p58 = scmp.eq.s32.totalorder %s17, 0
      %p59 = por %p57, %p58
      %p60 = scmp.ne.s32.totalorder %s48, %s49
      %p61 = scmp.eq.s32.totalorder %s18, 1
      %p62 = por %p60, %p61
      %p64 = scmp.ne.s32.totalorder %s49, %s63
      %p65 = scmp.eq.s32.totalorder %s18, 0
      %p66 = por %p64, %p65
      %s68 = sadd.s32 %s67, 1
      %p71 = scmp.eq.s32.totalorder %s12, 1
      %p72 = scmp.ne.s32.totalorder %s67, %s69
      %p73 = scmp.eq.s32.totalorder %s12, 0
      %p74 = por %p72, %p73
      %p75 = scmp.ne.s32.totalorder %s67, %s69
      %p76 = scmp.eq.s32.totalorder %s17, 1
      %p77 = por %p75, %p76
      %p78 = scmp.ne.s32.totalorder %s69, %s70
      %p79 = scmp.eq.s32.totalorder %s17, 0
      %p80 = por %p78, %p79
      %p81 = scmp.ne.s32.totalorder %s69, %s70
      %p82 = scmp.eq.s32.totalorder %s18, 1
      %p83 = por %p81, %p82
      %p85 = scmp.ne.s32.totalorder %s70, %s84
      %p86 = scmp.eq.s32.totalorder %s18, 0
      %p87 = por %p85, %p86
      %s89 = sadd.s32 %s88, 1
      %p92 = scmp.eq.s32.totalorder %s12, 1
      %p93 = scmp.ne.s32.totalorder %s88, %s90
      %p94 = scmp.eq.s32.totalorder %s12, 0
      %p95 = por %p93, %p94
      %p96 = scmp.ne.s32.totalorder %s88, %s90
      %p97 = scmp.eq.s32.totalorder %s17, 1
      %p98 = por %p96, %p97
      %p99 = scmp.ne.s32.totalorder %s90, %s91
      %p100 = scmp.eq.s32.totalorder %s17, 0
      %p101 = por %p99, %p100
      %p102 = scmp.ne.s32.totalorder %s90, %s91
      %p103 = scmp.eq.s32.totalorder %s18, 1
      %p104 = por %p102, %p103
      %p106 = scmp.ne.s32.totalorder %s91, %s105
      %p107 = scmp.eq.s32.totalorder %s18, 0
      %p108 = por %p106, %p107
      %s110 = sadd.s32 %s109, 1
      %p113 = scmp.eq.s32.totalorder %s12, 1
      %p114 = scmp.ne.s32.totalorder %s109, %s111
      %p115 = scmp.eq.s32.totalorder %s12, 0
      %p116 = por %p114, %p115
      %p117 = scmp.ne.s32.totalorder %s109, %s111
      %p118 = scmp.eq.s32.totalorder %s17, 1
      %p119 = por %p117, %p118
      %p120 = scmp.ne.s32.totalorder %s111, %s112
      %p121 = scmp.eq.s32.totalorder %s17, 0
      %p122 = por %p120, %p121
      %p123 = scmp.ne.s32.totalorder %s111, %s112
      %p124 = scmp.eq.s32.totalorder %s18, 1
      %p125 = por %p123, %p124
      %p127 = scmp.ne.s32.totalorder %s112, %s126
      %p128 = scmp.eq.s32.totalorder %s18, 0
      %p129 = por %p127, %p128
      %s130 = ssub.s32 %s12, %s19
      %p131 = scmp.eq.s32.totalorder %s130, 0
      %s133 = sadd.s32 %s132, 1
      %s134 = scalar_select %p131, %s132, %s133
      %p137 = pneg %p131
      %p138 = scmp.eq.s32.totalorder %s12, 1
      %p139 = por %p137, %p138
      %p140 = scmp.ne.s32.totalorder %s132, %s135
      %p141 = scmp.eq.s32.totalorder %s12, 0
      %p142 = por %p140, %p141
      %p143 = scmp.ne.s32.totalorder %s132, %s135
      %p144 = scmp.eq.s32.totalorder %s17, 1
      %p145 = por %p143, %p144
      %p146 = scmp.ne.s32.totalorder %s135, %s136
      %p147 = scmp.eq.s32.totalorder %s17, 0
      %p148 = por %p146, %p147
      %p149 = scmp.ne.s32.totalorder %s135, %s136
      %p150 = scmp.eq.s32.totalorder %s18, 1
      %p151 = por %p149, %p150
      %p153 = scmp.ne.s32.totalorder %s136, %s152
      %p154 = scmp.eq.s32.totalorder %s18, 0
      %p155 = por %p153, %p154
      %s156 = ssub.s32 %s12, %s19
      %p157 = scmp.eq.s32.totalorder %s156, 0
      %s159 = sadd.s32 %s158, 1
      %s160 = scalar_select %p157, %s158, %s159
      %p163 = pneg %p157
      %p164 = scmp.eq.s32.totalorder %s12, 1
      %p165 = por %p163, %p164
      %p166 = scmp.ne.s32.totalorder %s158, %s161
      %p167 = scmp.eq.s32.totalorder %s12, 0
      %p168 = por %p166, %p167
      %p169 = scmp.ne.s32.totalorder %s158, %s161
      %p170 = scmp.eq.s32.totalorder %s17, 1
      %p171 = por %p169, %p170
      %p172 = scmp.ne.s32.totalorder %s161, %s162
      %p173 = scmp.eq.s32.totalorder %s17, 0
      %p174 = por %p172, %p173
      %p175 = scmp.ne.s32.totalorder %s161, %s162
      %p176 = scmp.eq.s32.totalorder %s18, 1
      %p177 = por %p175, %p176
      %p179 = scmp.ne.s32.totalorder %s162, %s178
      %p180 = scmp.eq.s32.totalorder %s18, 0
      %p181 = por %p179, %p180
      %p182 = scmp.le.s32.totalorder 1, %s12
      %p183 = scmp.lt.s32.totalorder %s12, 3
      %p184 = pnand %p182, %p183
      %p185 = pneg %p184
      // Predicated region
      $region9: #{tpu_custom_call.1} parent=5 // pred_check
        _
      $region10: #{tpu_custom_call.1} parent=5 // pred_check_branch
        %187 = sbr.rel (%p184) target = $region12
      $region11: #{tpu_custom_call.1} parent=5 // pred_region
        %s188 = ssub.s32 %s12, 1
        // Predicated region
        $region13: #{tpu_custom_call.1} parent=11 // pred_check
          %p189 = pneg %p59
        $region14: #{tpu_custom_call.1} parent=11 // pred_check_branch
          %191 = sbr.rel (%p189) target = $region16
        $region15: #{tpu_custom_call.1} parent=11 // pred_region
          _
        $region16: #{tpu_custom_call.1} parent=11 // pred_fallthru
          _
        // Predicated region
        $region17: #{tpu_custom_call.1} parent=11 // pred_check
          %p192 = pneg %p80
        $region18: #{tpu_custom_call.1} parent=11 // pred_check_branch
          %194 = sbr.rel (%p192) target = $region20
        $region19: #{tpu_custom_call.1} parent=11 // pred_region
          _
        $region20: #{tpu_custom_call.1} parent=11 // pred_fallthru
          _
        // Predicated region
        $region21: #{tpu_custom_call.1} parent=11 // pred_check
          %p195 = pneg %p101
        $region22: #{tpu_custom_call.1} parent=11 // pred_check_branch
          %197 = sbr.rel (%p195) target = $region24
        $region23: #{tpu_custom_call.1} parent=11 // pred_region
          _
        $region24: #{tpu_custom_call.1} parent=11 // pred_fallthru
          _
        // Predicated region
        $region25: #{tpu_custom_call.1} parent=11 // pred_check
          %p198 = pneg %p122
        $region26: #{tpu_custom_call.1} parent=11 // pred_check_branch
          %200 = sbr.rel (%p198) target = $region28
        $region27: #{tpu_custom_call.1} parent=11 // pred_region
          _
        $region28: #{tpu_custom_call.1} parent=11 // pred_fallthru
          _
      $region12: #{tpu_custom_call.1} parent=5 // pred_fallthru
        _
      %p201 = scmp.lt.s32.totalorder %s12, 2
      // Predicated region
      $region29: #{tpu_custom_call.1} parent=5 // pred_check
        %p202 = pneg %p201
      $region30: #{tpu_custom_call.1} parent=5 // pred_check_branch
        %204 = sbr.rel (%p202) target = $region32
      $region31: #{tpu_custom_call.1} parent=5 // pred_region
        // Predicated region
        $region33: #{tpu_custom_call.1} parent=31 // pred_check
          %p205 = pneg %p32
        $region34: #{tpu_custom_call.1} parent=31 // pred_check_branch
          %207 = sbr.rel (%p205) target = $region36
        $region35: #{tpu_custom_call.1} parent=31 // pred_region
          %s208 = smul.u32 2, %s12
          %p209 = scmp.lt.s32.totalorder %s208, 3
          %s210 = scalar_select %p209, %s208, 3
          %s211 = smul.addr %s210, 8
          %s212 = scalar_lea.vmem %s0, %s211
          %s213 = smul.u32 2, %s12
        $region36: #{tpu_custom_call.1} parent=31 // pred_fallthru
          _
        // Predicated region
        $region37: #{tpu_custom_call.1} parent=31 // pred_check
          %p214 = pneg %p142
        $region38: #{tpu_custom_call.1} parent=31 // pred_check_branch
          %216 = sbr.rel (%p214) target = $region40
        $region39: #{tpu_custom_call.1} parent=31 // pred_region
          %s217 = smul.u32 2, %s12
          %p218 = scmp.lt.s32.totalorder %s217, 3
          %s219 = scalar_select %p218, %s217, 3
          %s220 = smul.addr %s219, 8
          %s221 = scalar_lea.vmem %s5, %s220
          %s222 = smul.u32 2, %s12
        $region40: #{tpu_custom_call.1} parent=31 // pred_fallthru
          _
      $region32: #{tpu_custom_call.1} parent=5 // pred_fallthru
        _
      %p223 = scmp.le.s32.totalorder 1, %s12
      %p224 = scmp.lt.s32.totalorder %s12, 3
      %p225 = pnand %p223, %p224
      %p226 = pneg %p225
      // Predicated region
      $region41: #{tpu_custom_call.1} parent=5 // pred_check
        _
      $region42: #{tpu_custom_call.1} parent=5 // pred_check_branch
        %228 = sbr.rel (%p225) target = $region44
      $region43: #{tpu_custom_call.1} parent=5 // pred_region
        %s229 = ssub.s32 %s12, 1
        %s230 = smul.u32 2, %s17
        %p231 = scmp.lt.s32.totalorder %s230, 3
        %s232 = scalar_select %p231, %s230, 3
        %s233 = smul.addr %s232, 8
        %s234 = scalar_lea.vmem %s0, %s233
        %p235 = pneg %p38
        %p236 = pneg %p35
        %p237 = pneg %p59
        %p238 = pneg %p56
        %p239 = pneg %p80
        %p240 = pneg %p77
        %p241 = pneg %p101
        %p242 = pneg %p98
        %p243 = pneg %p122
        %p244 = pneg %p119
        %s245 = smul.u32 2, %s17
        %p246 = scmp.lt.s32.totalorder %s245, 3
        %s247 = scalar_select %p246, %s245, 3
        %s248 = smul.addr %s247, 8
        %s249 = scalar_lea.vmem %s5, %s248
        %p250 = pneg %p148
        %p251 = pneg %p145
        %p252 = pneg %p174
        %p253 = pneg %p171
        %s254 = sand.u32 %s161, 1
        %s255 = sand.u32 %s161, 1
        %s256 = smul.addr %s255, 48
        %s257 = scalar_lea.vmem [#allocation2], %s256
        %s258 = smul.u32 2, %s17
        %p259 = scmp.lt.s32.totalorder %s258, 3
        %s260 = scalar_select %p259, %s258, 3
        %s261 = smul.addr %s260, 8
        %s262 = scalar_lea.vmem %s0, %s261
        %s263 = smul.u32 2, %s17
        %s264 = smul.u32 2, %s17
        %p265 = scmp.lt.s32.totalorder %s264, 3
        %s266 = scalar_select %p265, %s264, 3
        %s267 = smul.addr %s266, 8
        %s268 = scalar_lea.vmem %s5, %s267
        %s269 = smul.u32 2, %s17
        %s270 = smul.u32 2, %s17
        %v271 = vld [vmem:[%s262] sm:$0xff]
        %v272 = vld [vmem:[%s262 + $0x8] sm:$0xff]
        %v273 = vld [vmem:[%s1] sm:$0xff]
        %v274 = vld [vmem:[%s1 + $0x8] sm:$0xff]
        %v275 = vld [vmem:[%s2] sm:$0x1]
        %v277 = vlaneseq
        %v278 = vshrl.u32 %v277, 7
        %v279 = vsub.s32 0, %v278
        %v280 = vrot.slane %v275, %v279
        %vm282 = vcmask 130048
        %v284 = vsel %vm282, %v271, 0
        %v287 = vsel %vm282, %v272, 0
        %289 = vmatprep.subr.mxu0 0.0
        %290 = vmatpush1.msra.mxu0 %v273
        %291 = vmatprep.subr.mxu0 0.0
        %292 = vmatpush1.msra.mxu0 %v274
        %293 = vmatprep.subr.mxu0 0.0
        %294 = vmatpush1.msra.mxu0 0.0
        %295 = vmatprep.subr.mxu0 0.0
        %296 = vmatpush1.msra.mxu0 0.0
        %297 = vmatprep.subr.mxu0 0.0
        %298 = vmatpush1.msra.mxu0 0.0
        %299 = vmatprep.subr.mxu0 0.0
        %300 = vmatpush1.msra.mxu0 0.0
        %301 = vmatprep.subr.mxu0 0.0
        %302 = vmatpush1.msra.mxu0 0.0
        %303 = vmatprep.subr.mxu0 0.0
        %304 = vmatpush1.msra.mxu0 0.0
        %305 = vmatprep.subr.mxu0 0.0
        %306 = vmatpush1.msra.mxu0 0.0
        %307 = vmatprep.subr.mxu0 0.0
        %308 = vmatpush1.msra.mxu0 0.0
        %309 = vmatprep.subr.mxu0 0.0
        %310 = vmatpush1.msra.mxu0 0.0
        %311 = vmatprep.subr.mxu0 0.0
        %312 = vmatpush1.msra.mxu0 0.0
        %313 = vmatprep.subr.mxu0 0.0
        %314 = vmatpush1.msra.mxu0 0.0
        %315 = vmatprep.subr.mxu0 0.0
        %316 = vmatpush1.msra.mxu0 0.0
        %317 = vmatprep.subr.mxu0 0.0
        %318 = vmatpush1.msra.mxu0 0.0
        %319 = vmatprep.subr.mxu0 0.0
        %320 = vmatpush1.msra.mxu0 0.0
        %321 = vmatprep.subr.mxu0 0.0
        %322 = vmatpush1.msra.mxu0 0.0
        %323 = vmatprep.subr.mxu0 0.0
        %324 = vmatpush1.msra.mxu0 0.0
        %325 = vmatprep.subr.mxu0 0.0
        %326 = vmatpush1.msra.mxu0 0.0
        %327 = vmatprep.subr.mxu0 0.0
        %328 = vmatpush1.msra.mxu0 0.0
        %329 = vmatprep.subr.mxu0 0.0
        %330 = vmatpush1.msra.mxu0 0.0
        %331 = vmatprep.subr.mxu0 0.0
        %332 = vmatpush1.msra.mxu0 0.0
        %333 = vmatprep.subr.mxu0 0.0
        %334 = vmatpush1.msra.mxu0 0.0
        %335 = vmatprep.subr.mxu0 0.0
        %336 = vmatpush1.msra.mxu0 0.0
        %337 = vmatprep.subr.mxu0 0.0
        %338 = vmatpush1.msra.mxu0 0.0
        %339 = vmatprep.subr.mxu0 0.0
        %340 = vmatpush1.msra.mxu0 0.0
        %341 = vmatprep.subr.mxu0 0.0
        %342 = vmatpush1.msra.mxu0 0.0
        %343 = vmatprep.subr.mxu0 0.0
        %344 = vmatpush1.msra.mxu0 0.0
        %345 = vmatprep.subr.mxu0 0.0
        %346 = vmatpush1.msra.mxu0 0.0
        %347 = vmatprep.subr.mxu0 0.0
        %348 = vmatpush1.msra.mxu0 0.0
        %349 = vmatprep.subr.mxu0 0.0
        %350 = vmatpush1.msra.mxu0 0.0
        %351 = vmatprep.subr.mxu0 0.0
        %352 = vmatpush1.msra.mxu0 0.0
        %353 = vmatprep.mubr.f32.mxu0 0.0
        %354 = vmatmul.mubr.f32.gmra.mrb[0].mxu0 %v284
        %v355 = vpop.f32.mrb[0].mxu0
        %v356 = vadd.f32 %v280, %v355
        %v357 = vpop.f32.mrb[0].mxu0
        %358 = vmatprep.mubr.f32.mxu0 0.0
        %359 = vmatmul.mubr.f32.gmra.mrb[0].mxu0 %v287
        %v360 = vpop.f32.mrb[0].mxu0
        %v361 = vadd.f32 %v280, %v360
        %v362 = vpop.f32.mrb[0].mxu0
        %363 = vdwg.mxu0
        %v364 = vmax.f32 %v356, 0.0
        %v365 = vmax.f32 %v361, 0.0
        %v366 = vld [vmem:[%s3] sm:$0xff]
        %v367 = vld [vmem:[%s3 + $0x8] sm:$0xff]
        %v368 = vld [vmem:[%s3 + $0x10] sm:$0xff]
        %v369 = vld [vmem:[%s3 + $0x18] sm:$0xff]
        %v370 = vld [vmem:[%s4] sm:$0x1]
        %v372 = vlaneseq
        %v373 = vshrl.u32 %v372, 7
        %v374 = vsub.s32 0, %v373
        %v375 = vrot.slane %v370, %v374
        %vm377 = vcmask 261120
        %v379 = vsel %vm377, %v364, 0
        %v382 = vsel %vm377, %v365, 0
        %384 = vmatprep.subr.mxu0 0.0
        %385 = vmatpush1.msra.mxu0 %v366
        %386 = vmatprep.subr.mxu0 0.0
        %387 = vmatpush1.msra.mxu0 %v367
        %388 = vmatprep.subr.mxu0 0.0
        %389 = vmatpush1.msra.mxu0 %v368
        %390 = vmatprep.subr.mxu0 0.0
        %391 = vmatpush1.msra.mxu0 %v369
        %392 = vmatprep.subr.mxu0 0.0
        %393 = vmatpush1.msra.mxu0 0.0
        %394 = vmatprep.subr.mxu0 0.0
        %395 = vmatpush1.msra.mxu0 0.0
        %396 = vmatprep.subr.mxu0 0.0
        %397 = vmatpush1.msra.mxu0 0.0
        %398 = vmatprep.subr.mxu0 0.0
        %399 = vmatpush1.msra.mxu0 0.0
        %400 = vmatprep.subr.mxu0 0.0
        %401 = vmatpush1.msra.mxu0 0.0
        %402 = vmatprep.subr.mxu0 0.0
        %403 = vmatpush1.msra.mxu0 0.0
        %404 = vmatprep.subr.mxu0 0.0
        %405 = vmatpush1.msra.mxu0 0.0
        %406 = vmatprep.subr.mxu0 0.0
        %407 = vmatpush1.msra.mxu0 0.0
        %408 = vmatprep.subr.mxu0 0.0
        %409 = vmatpush1.msra.mxu0 0.0
        %410 = vmatprep.subr.mxu0 0.0
        %411 = vmatpush1.msra.mxu0 0.0
        %412 = vmatprep.subr.mxu0 0.0
        %413 = vmatpush1.msra.mxu0 0.0
        %414 = vmatprep.subr.mxu0 0.0
        %415 = vmatpush1.msra.mxu0 0.0
        %416 = vmatprep.subr.mxu0 0.0
        %417 = vmatpush1.msra.mxu0 0.0
        %418 = vmatprep.subr.mxu0 0.0
        %419 = vmatpush1.msra.mxu0 0.0
        %420 = vmatprep.subr.mxu0 0.0
        %421 = vmatpush1.msra.mxu0 0.0
        %422 = vmatprep.subr.mxu0 0.0
        %423 = vmatpush1.msra.mxu0 0.0
        %424 = vmatprep.subr.mxu0 0.0
        %425 = vmatpush1.msra.mxu0 0.0
        %426 = vmatprep.subr.mxu0 0.0
        %427 = vmatpush1.msra.mxu0 0.0
        %428 = vmatprep.subr.mxu0 0.0
        %429 = vmatpush1.msra.mxu0 0.0
        %430 = vmatprep.subr.mxu0 0.0
        %431 = vmatpush1.msra.mxu0 0.0
        %432 = vmatprep.subr.mxu0 0.0
        %433 = vmatpush1.msra.mxu0 0.0
        %434 = vmatprep.subr.mxu0 0.0
        %435 = vmatpush1.msra.mxu0 0.0
        %436 = vmatprep.subr.mxu0 0.0
        %437 = vmatpush1.msra.mxu0 0.0
        %438 = vmatprep.subr.mxu0 0.0
        %439 = vmatpush1.msra.mxu0 0.0
        %440 = vmatprep.subr.mxu0 0.0
        %441 = vmatpush1.msra.mxu0 0.0
        %442 = vmatprep.subr.mxu0 0.0
        %443 = vmatpush1.msra.mxu0 0.0
        %444 = vmatprep.subr.mxu0 0.0
        %445 = vmatpush1.msra.mxu0 0.0
        %446 = vmatprep.subr.mxu0 0.0
        %447 = vmatpush1.msra.mxu0 0.0
        %448 = vmatprep.mubr.f32.mxu0 0.0
        %449 = vmatmul.mubr.f32.gmra.mrb[0].mxu0 %v379
        %v450 = vpop.f32.mrb[0].mxu0
        %v451 = vadd.f32 %v375, %v450
        %v452 = vpop.f32.mrb[0].mxu0
        %453 = vmatprep.mubr.f32.mxu0 0.0
        %454 = vmatmul.mubr.f32.gmra.mrb[0].mxu0 %v382
        %v455 = vpop.f32.mrb[0].mxu0
        %v456 = vadd.f32 %v375, %v455
        %v457 = vpop.f32.mrb[0].mxu0
        %458 = vdwg.mxu0
        %v459 = vmul.f32 %v451, 0.5
        %v460 = vmul.f32 %v456, 0.5
        %v461 = vtanh.pop %v459
        %v462 = vtanh.pop %v460
        %v463 = vmul.f32 %v461, 0.5
        %v464 = vmul.f32 %v462, 0.5
        %v465 = vadd.f32 %v463, 0.5
        %v466 = vadd.f32 %v464, 0.5
        %v467 = vmax.f32 %v451, 0.0
        %v468 = vmax.f32 %v456, 0.0
        %v469 = vand.u32 2147483647, %v451
        %v470 = vand.u32 2147483647, %v456
        %v471 = vsub.f32 0.0, %v469
        %v472 = vsub.f32 0.0, %v470
        %v473 = vmul.f32 %v471, 1.442695
        %v474 = vpow.pop %v473
        %v475 = vmul.f32 %v472, 1.442695
        %v476 = vpow.pop %v475
        %v477 = vadd.f32 %v474, 1.0
        %v478 = vlog2.pop %v477
        %v479 = vmul.f32 %v478, 0.6931472
        %v480 = vmul.f32 -0.5, %v474
        %v481 = vadd.f32 %v480, 1.0
        %v482 = vmul.f32 %v481, %v474
        %v483 = vand.u32 2147483647, %v474
        %vm484 = vcmp.lt.f32.partialorder %v483, 0.0004427343
        %v485 = vsel %vm484, %v482, %v479
        %v486 = vadd.f32 %v476, 1.0
        %v487 = vlog2.pop %v486
        %v488 = vmul.f32 %v487, 0.6931472
        %v489 = vmul.f32 -0.5, %v476
        %v490 = vadd.f32 %v489, 1.0
        %v491 = vmul.f32 %v490, %v476
        %v492 = vand.u32 2147483647, %v476
        %vm493 = vcmp.lt.f32.partialorder %v492, 0.0004427343
        %v494 = vsel %vm493, %v491, %v488
        %v495 = vadd.f32 %v467, %v485
        %v496 = vadd.f32 %v468, %v494
        %v497 = vld [vmem:[%s268] sm:$0xff]
        %v498 = vld [vmem:[%s268 + $0x8] sm:$0xff]
        %501 = vrot.lane.b32.xlu0 %v495, 120
        %v502 = vpop.permute.xlu0 %501
        %503 = vrot.lane.b32.xlu0 %v496, 120
        %v504 = vpop.permute.xlu0 %503
        %v507 = vmul.f32 %v497, %v502
        %v508 = vmul.f32 %v498, %v504
        %v509 = vadd.f32 %v507, %v465
        %v510 = vadd.f32 %v508, %v466
        %vm511 = vcmask 64512
        %512 = vst.msk [vmem:[%s257] sm:$0xff] %vm511, %v509
        %513 = vst.msk [vmem:[%s257 + $0x8] sm:$0xff] %vm511, %v510
        %s514 = scalar_lea.vmem %s257, 16 [#allocation2]
        %515 = vst.msk [vmem:[%s514] sm:$0xff] %vm511, %v465
        %516 = vst.msk [vmem:[%s514 + $0x8] sm:$0xff] %vm511, %v466
        %s517 = scalar_lea.vmem %s257, 32 [#allocation2]
        %518 = vst.msk [vmem:[%s517] sm:$0xff] %vm511, %v502
        %519 = vst.msk [vmem:[%s517 + $0x8] sm:$0xff] %vm511, %v504
        %s520 = sand.u32 %s161, 1
        %s521 = sand.u32 %s161, 1
        %s522 = smul.addr %s521, 48
        %s523 = scalar_lea.vmem [#allocation2], %s522
        // Predicated region
        $region45: #{tpu_custom_call.1} parent=43 // pred_check
          %p524 = pneg %p171
        $region46: #{tpu_custom_call.1} parent=43 // pred_check_branch
          %526 = sbr.rel (%p524) target = $region48
        $region47: #{tpu_custom_call.1} parent=43 // pred_region
          %s527 = smul.u32 2, %s17
          %s528 = smul.addr %s527, 8
          %s529 = scalar_lea.vmem %s6, %s528
          // Predicated region
          $region49: #{tpu_custom_call.1} parent=47 // pred_check
            _
          $region50: #{tpu_custom_call.1} parent=47 // pred_check_branch
            %531 = sbr.rel (0) target = $region52
          $region51: #{tpu_custom_call.1} parent=47 // pred_region
            // Predicated region
            $region53: #{tpu_custom_call.1} parent=51 // pred_check
              _
            $region54: #{tpu_custom_call.1} parent=51 // pred_check_branch
              %533 = sbr.rel (0) target = $region56
            $region55: #{tpu_custom_call.1} parent=51 // pred_region
              // Predicated region
              $region68: #{tpu_custom_call.1} parent=55 // pred_check
                _
              $region69: #{tpu_custom_call.1} parent=55 // pred_check_branch
                %558 = sbr.rel (0) target = $region71
              $region70: #{tpu_custom_call.1} parent=55 // pred_region
                loop: start=0, step=1, limit=1
                $region72: #{tpu_custom_call.1} parent=70 // loop_pre_header
                  _
                $region73: #{tpu_custom_call.1} parent=70 // loop_header
                  %s560 = sphi 0, %s564
                  %p561 = scmp.ge.s32.totalorder %s560, 1
                  %s565 = sphi %s523, %s523
                  %s566 = sphi %s529, %s529
                $region74: #{tpu_custom_call.1} parent=70 // loop_header_branch
                  %563 = sbr.rel (%p561) target = $region78
                $region75: #{tpu_custom_call.1} parent=70 // loop_body
                  %v567 = vld [vmem:[%s565] sm:$0xff]
                  %568 = vst [vmem:[%s566] sm:$0xff] %v567
                  %v569 = vld [vmem:[%s565 + $0x8] sm:$0xff]
                  %570 = vst [vmem:[%s566 + $0x8] sm:$0xff] %v569
                  %v571 = vld [vmem:[%s565 + $0x10] sm:$0xff]
                  %572 = vst [vmem:[%s566 + $0x20] sm:$0xff] %v571
                  %v573 = vld [vmem:[%s565 + $0x18] sm:$0xff]
                  %574 = vst [vmem:[%s566 + $0x28] sm:$0xff] %v573
                  %v575 = vld [vmem:[%s565 + $0x20] sm:$0xff]
                  %576 = vst [vmem:[%s566 + $0x40] sm:$0xff] %v575
                  %v577 = vld [vmem:[%s565 + $0x28] sm:$0xff]
                  %578 = vst [vmem:[%s566 + $0x48] sm:$0xff] %v577
                $region76: #{tpu_custom_call.1} parent=70 // loop_footer
                  %s564 = sadd.s32 1, %s560
                $region77: #{tpu_custom_call.1} parent=70 // loop_footer_branch
                  %559 = sbr.rel target = $region73
                $region78: #{tpu_custom_call.1} parent=70 // loop_exit
                  _
              $region71: #{tpu_custom_call.1} parent=55 // pred_fallthru
                _
              // Predicated region
              $region79: #{tpu_custom_call.1} parent=55 // pred_check
                _
              $region80: #{tpu_custom_call.1} parent=55 // pred_check_branch
                %580 = sbr.rel target = $region82
              $region81: #{tpu_custom_call.1} parent=55 // pred_region
                _
              $region82: #{tpu_custom_call.1} parent=55 // pred_fallthru
                _
            $region56: #{tpu_custom_call.1} parent=51 // pred_fallthru
              _
            // Predicated region
            $region57: #{tpu_custom_call.1} parent=51 // pred_check
              _
            $region58: #{tpu_custom_call.1} parent=51 // pred_check_branch
              %535 = sbr.rel target = $region60
            $region59: #{tpu_custom_call.1} parent=51 // pred_region
              loop: start=0, step=1, limit=1
              $region61: #{tpu_custom_call.1} parent=59 // loop_pre_header
                _
              $region62: #{tpu_custom_call.1} parent=59 // loop_header
                %s538 = sphi 0, %s542
                %p539 = scmp.ge.s32.totalorder %s538, 1
                %s543 = sphi %s523, %s523
                %s544 = sphi %s529, %s529
              $region63: #{tpu_custom_call.1} parent=59 // loop_header_branch
                %541 = sbr.rel (%p539) target = $region67
              $region64: #{tpu_custom_call.1} parent=59 // loop_body
                %v545 = vld [vmem:[%s543] sm:$0xff]
                %546 = vst [vmem:[%s544] sm:$0xff] %v545
                %v547 = vld [vmem:[%s543 + $0x8] sm:$0xff]
                %548 = vst [vmem:[%s544 + $0x8] sm:$0xff] %v547
                %v549 = vld [vmem:[%s543 + $0x10] sm:$0xff]
                %550 = vst [vmem:[%s544 + $0x20] sm:$0xff] %v549
                %v551 = vld [vmem:[%s543 + $0x18] sm:$0xff]
                %552 = vst [vmem:[%s544 + $0x28] sm:$0xff] %v551
                %v553 = vld [vmem:[%s543 + $0x20] sm:$0xff]
                %554 = vst [vmem:[%s544 + $0x40] sm:$0xff] %v553
                %v555 = vld [vmem:[%s543 + $0x28] sm:$0xff]
                %556 = vst [vmem:[%s544 + $0x48] sm:$0xff] %v555
              $region65: #{tpu_custom_call.1} parent=59 // loop_footer
                %s542 = sadd.s32 1, %s538
              $region66: #{tpu_custom_call.1} parent=59 // loop_footer_branch
                %537 = sbr.rel target = $region62
              $region67: #{tpu_custom_call.1} parent=59 // loop_exit
                _
            $region60: #{tpu_custom_call.1} parent=51 // pred_fallthru
              _
          $region52: #{tpu_custom_call.1} parent=47 // pred_fallthru
            _
          %581 = vnop
        $region48: #{tpu_custom_call.1} parent=43 // pred_fallthru
          _
      $region44: #{tpu_custom_call.1} parent=5 // pred_fallthru
        _
      %p582 = scmp.le.s32.totalorder 2, %s12
      // Predicated region
      $region83: #{tpu_custom_call.1} parent=5 // pred_check
        %p583 = pneg %p582
      $region84: #{tpu_custom_call.1} parent=5 // pred_check_branch
        %585 = sbr.rel (%p583) target = $region86
      $region85: #{tpu_custom_call.1} parent=5 // pred_region
        %s586 = ssub.s32 %s12, 2
        // Predicated region
        $region87: #{tpu_custom_call.1} parent=85 // pred_check
          %p587 = pneg %p177
        $region88: #{tpu_custom_call.1} parent=85 // pred_check_branch
          %589 = sbr.rel (%p587) target = $region90
        $region89: #{tpu_custom_call.1} parent=85 // pred_region
          %s590 = sand.u32 %s162, 1
          %s591 = sand.u32 %s162, 1
          %s592 = smul.addr %s591, 48
          %s593 = scalar_lea.vmem [#allocation2], %s592
        $region90: #{tpu_custom_call.1} parent=85 // pred_fallthru
          _
      $region86: #{tpu_custom_call.1} parent=5 // pred_fallthru
        _
    $region6: #{tpu_custom_call.1} parent=1 // loop_footer
      %s16 = sadd.s32 1, %s12
    $region7: #{tpu_custom_call.1} parent=1 // loop_footer_branch
      %11 = sbr.rel target = $region3
    $region8: #{tpu_custom_call.1} parent=1 // loop_exit
      _

</llo_original>
